<compile_context>
chip_gen: v5e
topology: v5e:2x2
jax: 0.10.0
libtpu: 0.0.40
codegen_flags: <defaults>
</compile_context>

<pallas_src>
import jax
import jax.numpy as jnp
from jax.experimental import pallas as pl
from jax.experimental.pallas import tpu as pltpu

INPUT_SIZE = 57
HIDDEN_SIZE = 64
OUT_SIZE = 18

LANE = 128                      # vreg lane width (output slab width)
GATE_COLS = 4 * HIDDEN_SIZE     # 256 compact gate columns: r | z | i_n | h_n

MAX_BATCH_BLOCK = 1024          # rows per grid step (sweepable)
SPLIT_THRESHOLD = 256           # above this, force >= 2 grid steps (v7x 2nd TC)


def sarnn_kernel(x_ref, h_ref, wx_ref, wh_ref, b_ref, wl_ref, bl_ref, out_ref):
    """Fused GRU step + Linear + LogSoftmax on one batch block.

    x_ref  : (bb, 64)   bf16, x in lanes 0:57, lanes 57:64 zero
    h_ref  : (bb, 64)   f32 recurrent state
    wx_ref : (64, 256)  bf16 input->gate weights  (cols: r | z | i_n | h_n)
    wh_ref : (64, 256)  bf16 hidden->gate weights (cols: r | z | i_n | h_n)
    b_ref  : (1, 256)   f32 fused gate biases
    wl_ref : (64, 64)   bf16 linear weights (cols 0:18 valid, rest zero)
    bl_ref : (1, 64)    f32 linear bias     (cols 0:18 valid, rest zero)
    out_ref: (bb, 128)  f32 output slab: hn -> lanes 0:64, log-probs -> 64:82
    """
    H = HIDDEN_SIZE
    x = x_ref[...]                        # bf16
    h = h_ref[...]                        # f32

    # All gate pre-activations at once: two small K=64 MXU issues, f32 accum.
    g = (jnp.dot(x, wx_ref[...], preferred_element_type=jnp.float32)
         + jnp.dot(h.astype(jnp.bfloat16), wh_ref[...],
                   preferred_element_type=jnp.float32)
         + b_ref[...])                    # (bb, 256) f32

    # One sigmoid covers both r and z (they share the first 128-lane block).
    rz = jax.nn.sigmoid(g[:, 0:2 * H])    # (bb, 128)
    r = rz[:, 0:H]                        # (bb, 64)
    z = rz[:, H:2 * H]                    # (bb, 64)

    # n = tanh(i_n + r * (W_hn h + b_hn)); tanh only over the 64 useful lanes.
    n = jnp.tanh(g[:, 2 * H:3 * H] + r * g[:, 3 * H:4 * H])

    # GRU state update in f32 with the exact f32 h (recurrent precision).
    hn = (1.0 - z) * n + z * h            # (bb, 64) f32

    # Linear head (cols 18:64 of wl/bl are zero).
    logits = (jnp.dot(hn.astype(jnp.bfloat16), wl_ref[...],
                      preferred_element_type=jnp.float32) + bl_ref[...])

    lane = jax.lax.broadcasted_iota(jnp.int32, logits.shape, 1)
    masked = jnp.where(lane < OUT_SIZE, logits, jnp.float32(-1e30))
    m = jnp.max(masked, axis=-1, keepdims=True)
    shifted = masked - m
    lse = jnp.log(jnp.sum(jnp.exp(shifted), axis=-1, keepdims=True))
    logp = shifted - lse                  # (bb, 64), lanes 0:18 valid

    # Pack both results into one lane-dense 128-lane output slab; the
    # HBM-facing writeback of the block is a full-width unmasked DMA.
    out_ref[:, 0:H] = hn
    out_ref[:, H:2 * H] = logp


def pack_params(params):
    """One-time packing of PyTorch-layout GRU/Linear params into the compact,
    lane-aligned kernel layout (done once; never per call)."""
    H = HIDDEN_SIZE
    wih = params["weight_ih"].astype(jnp.float32)    # (3H, 57) rows: r | z | n
    whh = params["weight_hh"].astype(jnp.float32)    # (3H, 64)
    bih = params["bias_ih"].astype(jnp.float32)      # (3H,)
    bhh = params["bias_hh"].astype(jnp.float32)      # (3H,)
    wlin = params["weight_lin"].astype(jnp.float32)  # (18, 64)
    blin = params["bias_lin"].astype(jnp.float32)    # (18,)

    # Compact gate columns: [0:64)=r, [64:128)=z, [128:192)=i_n, [192:256)=h_n
    wx = jnp.zeros((H, GATE_COLS), jnp.float32)
    wx = wx.at[0:INPUT_SIZE, 0 * H:1 * H].set(wih[0:H, :].T)        # r (input)
    wx = wx.at[0:INPUT_SIZE, 1 * H:2 * H].set(wih[H:2 * H, :].T)    # z (input)
    wx = wx.at[0:INPUT_SIZE, 2 * H:3 * H].set(wih[2 * H:3 * H, :].T)  # i_n

    wh = jnp.zeros((H, GATE_COLS), jnp.float32)
    wh = wh.at[:, 0 * H:1 * H].set(whh[0:H, :].T)                   # r (hidden)
    wh = wh.at[:, 1 * H:2 * H].set(whh[H:2 * H, :].T)               # z (hidden)
    wh = wh.at[:, 3 * H:4 * H].set(whh[2 * H:3 * H, :].T)           # h_n

    b = jnp.zeros((1, GATE_COLS), jnp.float32)
    b = b.at[0, 0 * H:1 * H].set(bih[0:H] + bhh[0:H])               # r
    b = b.at[0, 1 * H:2 * H].set(bih[H:2 * H] + bhh[H:2 * H])       # z
    b = b.at[0, 2 * H:3 * H].set(bih[2 * H:3 * H])                  # i_n (b_in)
    b = b.at[0, 3 * H:4 * H].set(bhh[2 * H:3 * H])                  # h_n (b_hn)

    wl = jnp.zeros((H, H), jnp.float32).at[:, 0:OUT_SIZE].set(wlin.T)
    bl = jnp.zeros((1, H), jnp.float32).at[0, 0:OUT_SIZE].set(blin)

    return {
        "wx": wx.astype(jnp.bfloat16),   # MXU inputs in bf16 (f32 accumulate)
        "wh": wh.astype(jnp.bfloat16),
        "b": b,                          # biases stay f32 (added post-MXU)
        "wl": wl.astype(jnp.bfloat16),
        "bl": bl,
    }


def _round_up(v, m):
    return ((v + m - 1) // m) * m


def _cdiv(a, b):
    return (a + b - 1) // b


def sarnn_forward(x, h, packed):
    """x: (B, 57) f32, h: (1, B, 64) f32 -> (log_probs (1, B, 18), hn (1, B, 64))."""
    B = x.shape[0]
    h0 = h[0]

    # Batch block: multiple of 16 (bf16 sublane packing), as large as possible
    # (<= MAX_BATCH_BLOCK), chosen so there is no near-empty tail block, and
    # >= 2 blocks for large batches so the "parallel" grid axis can be sharded
    # over v7x's second TensorCore.
    b16 = _round_up(max(B, 1), 16)
    if b16 <= SPLIT_THRESHOLD:
        nblk = 1
    else:
        nblk = max(2, _cdiv(b16, MAX_BATCH_BLOCK))
    bb = _round_up(_cdiv(b16, nblk), 16)
    b_pad = nblk * bb

    # Only cheap pads — no zeros + scatter slab construction per call.
    x_p = jnp.pad(x.astype(jnp.bfloat16),
                  ((0, b_pad - B), (0, HIDDEN_SIZE - INPUT_SIZE)))    # (b_pad, 64) bf16
    h_p = jnp.pad(h0.astype(jnp.float32), ((0, b_pad - B), (0, 0)))   # (b_pad, 64) f32

    # Advisory cost estimate (kernel is launch-latency / memory bound).
    flops = b_pad * 2 * (HIDDEN_SIZE * GATE_COLS * 2 + HIDDEN_SIZE * HIDDEN_SIZE)
    transcendentals = b_pad * (2 * HIDDEN_SIZE + HIDDEN_SIZE + HIDDEN_SIZE + 1)
    bytes_accessed = (b_pad * (HIDDEN_SIZE * 2 + HIDDEN_SIZE * 4 + LANE * 4)
                      + 2 * HIDDEN_SIZE * GATE_COLS * 2 + GATE_COLS * 4
                      + HIDDEN_SIZE * HIDDEN_SIZE * 2 + HIDDEN_SIZE * 4)

    slab = pl.pallas_call(
        sarnn_kernel,
        out_shape=jax.ShapeDtypeStruct((b_pad, LANE), jnp.float32),
        grid=(nblk,),
        in_specs=[
            pl.BlockSpec((bb, HIDDEN_SIZE), lambda i: (i, 0)),           # x (per block)
            pl.BlockSpec((bb, HIDDEN_SIZE), lambda i: (i, 0)),           # h (per block)
            pl.BlockSpec((HIDDEN_SIZE, GATE_COLS), lambda i: (0, 0)),    # wx (resident)
            pl.BlockSpec((HIDDEN_SIZE, GATE_COLS), lambda i: (0, 0)),    # wh (resident)
            pl.BlockSpec((1, GATE_COLS), lambda i: (0, 0)),              # gate bias
            pl.BlockSpec((HIDDEN_SIZE, HIDDEN_SIZE), lambda i: (0, 0)),  # linear W
            pl.BlockSpec((1, HIDDEN_SIZE), lambda i: (0, 0)),            # linear b
        ],
        out_specs=pl.BlockSpec((bb, LANE), lambda i: (i, 0)),
        compiler_params=pltpu.CompilerParams(
            dimension_semantics=("parallel",),        # 2nd TC on v7x when nblk >= 2
            vmem_limit_bytes=32 * 1024 * 1024),       # safe on v5e's 16 MiB default
        cost_estimate=pl.CostEstimate(
            flops=int(flops),
            transcendentals=int(transcendentals),
            bytes_accessed=int(bytes_accessed)),
    )(x_p, h_p, packed["wx"], packed["wh"], packed["b"],
      packed["wl"], packed["bl"])

    hn = slab[:B, 0:HIDDEN_SIZE]
    logp = slab[:B, HIDDEN_SIZE:HIDDEN_SIZE + OUT_SIZE]
    return logp[None, :, :], hn[None, :, :]


def init_params(key):
    """Deterministic init mirroring PyTorch's default uniform(-1/sqrt(H), 1/sqrt(H))."""
    ks = jax.random.split(key, 6)
    stdv = 1.0 / (HIDDEN_SIZE ** 0.5)
    u = lambda k, shape: jax.random.uniform(k, shape, jnp.float32, -stdv, stdv)
    return {
        "weight_ih": u(ks[0], (3 * HIDDEN_SIZE, INPUT_SIZE)),   # (192, 57)
        "weight_hh": u(ks[1], (3 * HIDDEN_SIZE, HIDDEN_SIZE)),  # (192, 64)
        "bias_ih": u(ks[2], (3 * HIDDEN_SIZE,)),                # (192,)
        "bias_hh": u(ks[3], (3 * HIDDEN_SIZE,)),                # (192,)
        "weight_lin": u(ks[4], (OUT_SIZE, HIDDEN_SIZE)),        # (18, 64)
        "bias_lin": u(ks[5], (OUT_SIZE,)),                      # (18,)
    }


def sarnn_reference(x, h, params):
    """Pure-JAX f32 reference of the same forward pass (sanity check)."""
    h0 = h[0]
    gi = x @ params["weight_ih"].T + params["bias_ih"]
    gh = h0 @ params["weight_hh"].T + params["bias_hh"]
    H = HIDDEN_SIZE
    r = jax.nn.sigmoid(gi[:, :H] + gh[:, :H])
    z = jax.nn.sigmoid(gi[:, H:2 * H] + gh[:, H:2 * H])
    n = jnp.tanh(gi[:, 2 * H:] + r * gh[:, 2 * H:])
    hn = (1.0 - z) * n + z * h0
    logits = hn @ params["weight_lin"].T + params["bias_lin"]
    logp = jax.nn.log_softmax(logits, axis=-1)
    return logp[None], hn[None]


if __name__ == "__main__":
    key = jax.random.PRNGKey(0)
    kx, kh, kp = jax.random.split(key, 3)

    B = 2
    x = jax.random.normal(kx, (B, INPUT_SIZE), jnp.float32)        # input features
    h = jax.random.normal(kh, (1, B, HIDDEN_SIZE), jnp.float32)    # initial GRU hidden state
    params = init_params(kp)
    packed = pack_params(params)                                    # one-time packing

    fwd = jax.jit(sarnn_forward)
    logp, hn = fwd(x, h, packed)
    jax.block_until_ready((logp, hn))

    logp_ref, hn_ref = sarnn_reference(x, h, params)
    assert logp.shape == (1, B, OUT_SIZE) and hn.shape == (1, B, HIDDEN_SIZE)
    # bf16 MXU inputs (f32 accumulate / f32 elementwise) vs the pure-f32
    # reference -> expected abs error is ~1e-2; 5e-2 gives comfortable margin.
    err_h = float(jnp.max(jnp.abs(hn - hn_ref)))
    err_p = float(jnp.max(jnp.abs(logp - logp_ref)))
    assert jnp.allclose(hn, hn_ref, atol=5e-2, rtol=0.0), err_h
    assert jnp.allclose(logp, logp_ref, atol=5e-2, rtol=0.0), err_p
    assert jnp.allclose(jnp.exp(logp).sum(-1), 1.0, atol=1e-3)

    print("KERNEL_OK")
</pallas_src>

<mosaic_0001>
module attributes {stable_mosaic.version = 11 : i64} {
  func.func @sarnn_kernel(%arg0: i32, %arg1: memref<16x64xbf16, #tpu.memory_space<vmem>>, %arg2: memref<16x64xf32, #tpu.memory_space<vmem>>, %arg3: memref<64x256xbf16, #tpu.memory_space<vmem>>, %arg4: memref<64x256xbf16, #tpu.memory_space<vmem>>, %arg5: memref<1x256xf32, #tpu.memory_space<vmem>>, %arg6: memref<64x64xbf16, #tpu.memory_space<vmem>>, %arg7: memref<1x64xf32, #tpu.memory_space<vmem>>, %arg8: memref<16x128xf32, #tpu.memory_space<vmem>>) attributes {dimension_semantics = [#tpu.dimension_semantics<parallel>], iteration_bounds = array<i64: 1>, scalar_prefetch = 0 : i64, scratch_operands = 0 : i64, tpu.core_type = #tpu.core_type<tc>, window_params = [{transform_indices = @transform_0, window_bounds = array<i64: 16, 64>}, {transform_indices = @transform_1, window_bounds = array<i64: 16, 64>}, {pipeline_mode = #tpu.pipeline_mode<synchronous>, transform_indices = @transform_2, window_bounds = array<i64: 64, 256>}, {pipeline_mode = #tpu.pipeline_mode<synchronous>, transform_indices = @transform_3, window_bounds = array<i64: 64, 256>}, {pipeline_mode = #tpu.pipeline_mode<synchronous>, transform_indices = @transform_4, window_bounds = array<i64: 1, 256>}, {pipeline_mode = #tpu.pipeline_mode<synchronous>, transform_indices = @transform_5, window_bounds = array<i64: 64, 64>}, {pipeline_mode = #tpu.pipeline_mode<synchronous>, transform_indices = @transform_6, window_bounds = array<i64: 1, 64>}, {transform_indices = @transform_7, window_bounds = array<i64: 16, 128>}]} {
    %c0 = arith.constant 0 : index
    %c0_0 = arith.constant 0 : index
    %0 = vector.load %arg1[%c0, %c0_0] : memref<16x64xbf16, #tpu.memory_space<vmem>>, vector<16x64xbf16>
    %c0_1 = arith.constant 0 : index
    %c0_2 = arith.constant 0 : index
    %1 = vector.load %arg2[%c0_1, %c0_2] : memref<16x64xf32, #tpu.memory_space<vmem>>, vector<16x64xf32>
    %c0_3 = arith.constant 0 : index
    %c0_4 = arith.constant 0 : index
    %2 = vector.load %arg3[%c0_3, %c0_4] : memref<64x256xbf16, #tpu.memory_space<vmem>>, vector<64x256xbf16>
    %cst = arith.constant dense<0.000000e+00> : vector<16x256xf32>
    %3 = tpu.matmul %0, %2, %cst {dimension_numbers = #tpu.dot_dimension_numbers<[1], [0], [0], [1], [0, 0, 1, 1], [], []>} : vector<16x64xbf16>, vector<64x256xbf16>, vector<16x256xf32> -> vector<16x256xf32>
    %4 = arith.truncf %1 : vector<16x64xf32> to vector<16x64xbf16>
    %c0_5 = arith.constant 0 : index
    %c0_6 = arith.constant 0 : index
    %5 = vector.load %arg4[%c0_5, %c0_6] : memref<64x256xbf16, #tpu.memory_space<vmem>>, vector<64x256xbf16>
    %cst_7 = arith.constant dense<0.000000e+00> : vector<16x256xf32>
    %6 = tpu.matmul %4, %5, %cst_7 {dimension_numbers = #tpu.dot_dimension_numbers<[1], [0], [0], [1], [0, 0, 1, 1], [], []>} : vector<16x64xbf16>, vector<64x256xbf16>, vector<16x256xf32> -> vector<16x256xf32>
    %7 = arith.addf %3, %6 : vector<16x256xf32>
    %c0_8 = arith.constant 0 : index
    %c0_9 = arith.constant 0 : index
    %8 = vector.load %arg5[%c0_8, %c0_9] : memref<1x256xf32, #tpu.memory_space<vmem>>, vector<1x256xf32>
    %9 = vector.broadcast %8 : vector<1x256xf32> to vector<16x256xf32>
    %10 = arith.addf %7, %9 : vector<16x256xf32>
    %11 = vector.extract_strided_slice %10 {offsets = [0, 0], sizes = [16, 128], strides = [1, 1]} : vector<16x256xf32> to vector<16x128xf32>
    %12 = arith.negf %11 : vector<16x128xf32>
    %13 = math.exp %12 : vector<16x128xf32>
    %cst_10 = arith.constant 1.000000e+00 : f32
    %14 = vector.broadcast %cst_10 : f32 to vector<16x128xf32>
    %15 = arith.addf %14, %13 : vector<16x128xf32>
    %16 = arith.divf %14, %15 : vector<16x128xf32>
    %17 = vector.extract_strided_slice %16 {offsets = [0, 0], sizes = [16, 64], strides = [1, 1]} : vector<16x128xf32> to vector<16x64xf32>
    %18 = vector.extract_strided_slice %16 {offsets = [0, 64], sizes = [16, 64], strides = [1, 1]} : vector<16x128xf32> to vector<16x64xf32>
    %19 = vector.extract_strided_slice %10 {offsets = [0, 128], sizes = [16, 64], strides = [1, 1]} : vector<16x256xf32> to vector<16x64xf32>
    %20 = vector.extract_strided_slice %10 {offsets = [0, 192], sizes = [16, 64], strides = [1, 1]} : vector<16x256xf32> to vector<16x64xf32>
    %21 = arith.mulf %17, %20 : vector<16x64xf32>
    %22 = arith.addf %19, %21 : vector<16x64xf32>
    %23 = math.tanh %22 : vector<16x64xf32>
    %cst_11 = arith.constant 1.000000e+00 : f32
    %24 = vector.broadcast %cst_11 : f32 to vector<16x64xf32>
    %25 = arith.subf %24, %18 : vector<16x64xf32>
    %26 = arith.mulf %25, %23 : vector<16x64xf32>
    %27 = arith.mulf %18, %1 : vector<16x64xf32>
    %28 = arith.addf %26, %27 : vector<16x64xf32>
    %29 = arith.truncf %28 : vector<16x64xf32> to vector<16x64xbf16>
    %c0_12 = arith.constant 0 : index
    %c0_13 = arith.constant 0 : index
    %30 = vector.load %arg6[%c0_12, %c0_13] : memref<64x64xbf16, #tpu.memory_space<vmem>>, vector<64x64xbf16>
    %cst_14 = arith.constant dense<0.000000e+00> : vector<16x64xf32>
    %31 = tpu.matmul %29, %30, %cst_14 {dimension_numbers = #tpu.dot_dimension_numbers<[1], [0], [0], [1], [0, 0, 1, 1], [], []>} : vector<16x64xbf16>, vector<64x64xbf16>, vector<16x64xf32> -> vector<16x64xf32>
    %c0_15 = arith.constant 0 : index
    %c0_16 = arith.constant 0 : index
    %32 = vector.load %arg7[%c0_15, %c0_16] : memref<1x64xf32, #tpu.memory_space<vmem>>, vector<1x64xf32>
    %33 = vector.broadcast %32 : vector<1x64xf32> to vector<16x64xf32>
    %34 = arith.addf %31, %33 : vector<16x64xf32>
    %35 = tpu.iota {dimensions = array<i32: 1>} : vector<16x64xi32>
    %c18_i32 = arith.constant 18 : i32
    %36 = vector.broadcast %c18_i32 : i32 to vector<16x64xi32>
    %37 = arith.cmpi slt, %35, %36 : vector<16x64xi32>
    %cst_17 = arith.constant -1.000000e+30 : f32
    %38 = vector.broadcast %cst_17 : f32 to vector<16x64xf32>
    %39 = arith.select %37, %34, %38 : vector<16x64xi1>, vector<16x64xf32>
    %cst_18 = arith.constant dense<0xFF800000> : vector<16xf32>
    %40 = vector.multi_reduction <maximumf>, %39, %cst_18 [1] : vector<16x64xf32> to vector<16xf32>
    %41 = vector.shape_cast %40 : vector<16xf32> to vector<16x1xf32>
    %42 = vector.broadcast %41 : vector<16x1xf32> to vector<16x64xf32>
    %43 = arith.subf %39, %42 : vector<16x64xf32>
    %44 = math.exp %43 : vector<16x64xf32>
    %cst_19 = arith.constant dense<0.000000e+00> : vector<16xf32>
    %45 = vector.multi_reduction <add>, %44, %cst_19 [1] : vector<16x64xf32> to vector<16xf32>
    %46 = vector.shape_cast %45 : vector<16xf32> to vector<16x1xf32>
    %47 = math.log %46 : vector<16x1xf32>
    %48 = vector.broadcast %47 : vector<16x1xf32> to vector<16x64xf32>
    %49 = arith.subf %43, %48 : vector<16x64xf32>
    %c0_20 = arith.constant 0 : index
    %c0_21 = arith.constant 0 : index
    %50 = vector.load %arg8[%c0_20, %c0_21] : memref<16x128xf32, #tpu.memory_space<vmem>>, vector<16x64xf32>
    tpu.vector_store %arg8[%c0_20, %c0_21], %28 {strides = array<i32>} : memref<16x128xf32, #tpu.memory_space<vmem>>, vector<16x64xf32>,
    %c0_22 = arith.constant 0 : index
    %c64 = arith.constant 64 : index
    %51 = vector.load %arg8[%c0_22, %c64] : memref<16x128xf32, #tpu.memory_space<vmem>>, vector<16x64xf32>
    tpu.vector_store %arg8[%c0_22, %c64], %49 {strides = array<i32>} : memref<16x128xf32, #tpu.memory_space<vmem>>, vector<16x64xf32>,
    return
  }
  func.func @transform_0(%arg0: i32) -> (i32, i32) {
    %c0_i32 = arith.constant 0 : i32
    %c0_i32_0 = arith.constant 0 : i32
    return %arg0, %c0_i32 : i32, i32
  }
  func.func @transform_1(%arg0: i32) -> (i32, i32) {
    %c0_i32 = arith.constant 0 : i32
    %c0_i32_0 = arith.constant 0 : i32
    return %arg0, %c0_i32 : i32, i32
  }
  func.func @transform_2(%arg0: i32) -> (i32, i32) {
    %c0_i32 = arith.constant 0 : i32
    %c0_i32_0 = arith.constant 0 : i32
    %c0_i32_1 = arith.constant 0 : i32
    return %c0_i32, %c0_i32_0 : i32, i32
  }
  func.func @transform_3(%arg0: i32) -> (i32, i32) {
    %c0_i32 = arith.constant 0 : i32
    %c0_i32_0 = arith.constant 0 : i32
    %c0_i32_1 = arith.constant 0 : i32
    return %c0_i32, %c0_i32_0 : i32, i32
  }
  func.func @transform_4(%arg0: i32) -> (i32, i32) {
    %c0_i32 = arith.constant 0 : i32
    %c0_i32_0 = arith.constant 0 : i32
    %c0_i32_1 = arith.constant 0 : i32
    return %c0_i32, %c0_i32_0 : i32, i32
  }
  func.func @transform_5(%arg0: i32) -> (i32, i32) {
    %c0_i32 = arith.constant 0 : i32
    %c0_i32_0 = arith.constant 0 : i32
    %c0_i32_1 = arith.constant 0 : i32
    return %c0_i32, %c0_i32_0 : i32, i32
  }
  func.func @transform_6(%arg0: i32) -> (i32, i32) {
    %c0_i32 = arith.constant 0 : i32
    %c0_i32_0 = arith.constant 0 : i32
    %c0_i32_1 = arith.constant 0 : i32
    return %c0_i32, %c0_i32_0 : i32, i32
  }
  func.func @transform_7(%arg0: i32) -> (i32, i32) {
    %c0_i32 = arith.constant 0 : i32
    %c0_i32_0 = arith.constant 0 : i32
    return %arg0, %c0_i32 : i32, i32
  }
}

</mosaic_0001>

<llo_original>
// kernel: sarnn_forward.1
$region0: #{sarnn_forward.1}
  #allocation0 [shape = 'u32[]', space=smem, size = 0x4, offset = 0x4, fixed_abs, tag = 'smem constant byte address 0x4 - core index']
  #allocation1 [shape = 'u32[72,128]{1,0:T(1,128)}', space=vmem, size = 0x9000, scoped, tag = 'internal scratch']
  %s0 = inlined_call_operand.vmem [shape: bf16[16,64], index: 0, kind: input, shape index: {}]
  %s1 = inlined_call_operand.vmem [shape: f32[16,64], index: 1, kind: input, shape index: {}]
  %s2 = inlined_call_operand.hbm [shape: bf16[64,256], index: 2, kind: input, shape index: {}]
  %s3 = inlined_call_operand.hbm [shape: bf16[64,256], index: 3, kind: input, shape index: {}]
  %s4 = inlined_call_operand.vmem [shape: f32[1,256], index: 4, kind: input, shape index: {}]
  %s5 = inlined_call_operand.vmem [shape: bf16[64,64], index: 5, kind: input, shape index: {}]
  %s6 = inlined_call_operand.vmem [shape: f32[1,64], index: 6, kind: input, shape index: {}]
  %s7 = inlined_call_operand.vmem [shape: f32[16,128], index: 7, kind: output, shape index: {}]
  %s8 = sld [smem:[#allocation0]]
  $region46: #{sarnn_forward.1} parent=0
    _
  %s10 = ssub.s32 1, %s8
  %s11 = scalar_select 0, %s10, %s8
  $region1: #{sarnn_forward.1} parent=0
    #allocation2 [shape = 'u8[32768]{0}', space=vmem, size = 0x8000, scoped, tag = 'input window, operand 2, single buffered']
    #allocation3 [shape = 's32[1]{0}', space=sflag, size = 0x4, scoped, tag = 'scoped memory for sarnn_forward.1']
    #allocation4 [shape = 'u8[32768]{0}', space=vmem, size = 0x8000, scoped, tag = 'input window, operand 3, single buffered']
    #allocation5 [shape = 's32[1]{0}', space=sflag, size = 0x4, scoped, tag = 'scoped memory for sarnn_forward.1']
    %12 = vsyncpa [#allocation3], 0
    %13 = vsyncpa [#allocation5], 0
    // Predicated region
    $region2: #{sarnn_forward.1} parent=1 // pred_check
      _
    $region3: #{sarnn_forward.1} parent=1 // pred_check_branch
      %15 = sbr.rel (0) target = $region5
    $region4: #{sarnn_forward.1} parent=1 // pred_region
      _
    $region5: #{sarnn_forward.1} parent=1 // pred_fallthru
      _
    // Predicated region
    $region6: #{sarnn_forward.1} parent=1 // pred_check
      _
    $region7: #{sarnn_forward.1} parent=1 // pred_check_branch
      %17 = sbr.rel (0) target = $region9
    $region8: #{sarnn_forward.1} parent=1 // pred_region
      _
    $region9: #{sarnn_forward.1} parent=1 // pred_fallthru
      _
    // Predicated region
    $region10: #{sarnn_forward.1} parent=1 // pred_check
      _
    $region11: #{sarnn_forward.1} parent=1 // pred_check_branch
      %19 = sbr.rel (0) target = $region13
    $region12: #{sarnn_forward.1} parent=1 // pred_region
      %21 = vsyncadd [#allocation3], 0
      %s22 = sshll.u32 %s2, 4
      %s23 = int_to_ptr.hbm [resolvable:$true] %s22
      %s24 = sshll.u32 [#allocation2], 4
      %s25 = int_to_ptr.vmem [resolvable:$true] %s24
      %30 = dma.hbm_to_vmem [thread:$0]  %s23, 1024, %s25, [#allocation3], 128, 128, 8
    $region13: #{sarnn_forward.1} parent=1 // pred_fallthru
      _
    // Predicated region
    $region14: #{sarnn_forward.1} parent=1 // pred_check
      _
    $region15: #{sarnn_forward.1} parent=1 // pred_check_branch
      %32 = sbr.rel (0) target = $region17
    $region16: #{sarnn_forward.1} parent=1 // pred_region
      %34 = vsyncadd [#allocation5], 0
      %s35 = sshll.u32 %s3, 4
      %s36 = int_to_ptr.hbm [resolvable:$true] %s35
      %s37 = sshll.u32 [#allocation4], 4
      %s38 = int_to_ptr.vmem [resolvable:$true] %s37
      %43 = dma.hbm_to_vmem [thread:$0]  %s36, 1024, %s38, [#allocation5], 128, 128, 8
    $region17: #{sarnn_forward.1} parent=1 // pred_fallthru
      _
    // Predicated region
    $region18: #{sarnn_forward.1} parent=1 // pred_check
      _
    $region19: #{sarnn_forward.1} parent=1 // pred_check_branch
      %45 = sbr.rel (0) target = $region21
    $region20: #{sarnn_forward.1} parent=1 // pred_region
      _
    $region21: #{sarnn_forward.1} parent=1 // pred_fallthru
      _
    // Predicated region
    $region22: #{sarnn_forward.1} parent=1 // pred_check
      _
    $region23: #{sarnn_forward.1} parent=1 // pred_check_branch
      %47 = sbr.rel (0) target = $region25
    $region24: #{sarnn_forward.1} parent=1 // pred_region
      _
    $region25: #{sarnn_forward.1} parent=1 // pred_fallthru
      _
    // Predicated region
    $region26: #{sarnn_forward.1} parent=1 // pred_check
      _
    $region27: #{sarnn_forward.1} parent=1 // pred_check_branch
      %49 = sbr.rel (0) target = $region29
    $region28: #{sarnn_forward.1} parent=1 // pred_region
      _
    $region29: #{sarnn_forward.1} parent=1 // pred_fallthru
      _
    // Predicated region
    $region30: #{sarnn_forward.1} parent=1 // pred_check
      _
    $region31: #{sarnn_forward.1} parent=1 // pred_check_branch
      %51 = sbr.rel (0) target = $region33
    $region32: #{sarnn_forward.1} parent=1 // pred_region
      %53 = dma.done [#allocation3], 1024
    $region33: #{sarnn_forward.1} parent=1 // pred_fallthru
      _
    // Predicated region
    $region34: #{sarnn_forward.1} parent=1 // pred_check
      _
    $region35: #{sarnn_forward.1} parent=1 // pred_check_branch
      %55 = sbr.rel (0) target = $region37
    $region36: #{sarnn_forward.1} parent=1 // pred_region
      %57 = dma.done [#allocation5], 1024
    $region37: #{sarnn_forward.1} parent=1 // pred_fallthru
      _
    %v59 = vld [vmem:[%s0] sm:$0xf]
    %v60 = vld [vmem:[%s0 + $0x4] sm:$0xf]
    %v61 = vld [vmem:[%s1] sm:$0xff]
    %v62 = vld [vmem:[%s1 + $0x8] sm:$0xff]
    %v63 = vld [vmem:[#allocation2] sm:$0xff]
    %v64 = vld [vmem:[#allocation2 + $0x8] sm:$0xff]
    %v65 = vld [vmem:[#allocation2 + $0x10] sm:$0xff]
    %v66 = vld [vmem:[#allocation2 + $0x18] sm:$0xff]
    %v67 = vld [vmem:[#allocation2 + $0x20] sm:$0xff]
    %v68 = vld [vmem:[#allocation2 + $0x28] sm:$0xff]
    %v69 = vld [vmem:[#allocation2 + $0x30] sm:$0xff]
    %v70 = vld [vmem:[#allocation2 + $0x38] sm:$0xff]
    %v71 = vpack.c.bf16 %v62, %v61
    %v72 = vld [vmem:[#allocation4] sm:$0xff]
    %v73 = vld [vmem:[#allocation4 + $0x8] sm:$0xff]
    %v74 = vld [vmem:[#allocation4 + $0x10] sm:$0xff]
    %v75 = vld [vmem:[#allocation4 + $0x18] sm:$0xff]
    %v76 = vld [vmem:[#allocation4 + $0x20] sm:$0xff]
    %v77 = vld [vmem:[#allocation4 + $0x28] sm:$0xff]
    %v78 = vld [vmem:[#allocation4 + $0x30] sm:$0xff]
    %v79 = vld [vmem:[#allocation4 + $0x38] sm:$0xff]
    %v88 = vunpack.c.l.b16 %v72
    %v89 = vunpack.c.h.b16 %v72
    %v90 = vunpack.c.l.b16 %v73
    %v91 = vunpack.c.h.b16 %v73
    %v92 = vunpack.c.l.b16 %v74
    %v93 = vunpack.c.h.b16 %v74
    %v94 = vunpack.c.l.b16 %v75
    %v95 = vunpack.c.h.b16 %v75
    %v96 = vunpack.c.l.b16 %v76
    %v97 = vunpack.c.h.b16 %v76
    %v98 = vunpack.c.l.b16 %v77
    %v99 = vunpack.c.h.b16 %v77
    %v100 = vunpack.c.l.b16 %v78
    %v101 = vunpack.c.h.b16 %v78
    %v102 = vunpack.c.l.b16 %v79
    %v103 = vunpack.c.h.b16 %v79
    %v104 = vpack.c.b16 %v90, %v88
    %v105 = vpack.c.b16 %v91, %v89
    %v106 = vpack.c.b16 %v94, %v92
    %v107 = vpack.c.b16 %v95, %v93
    %v108 = vpack.c.b16 %v98, %v96
    %v109 = vpack.c.b16 %v99, %v97
    %v110 = vpack.c.b16 %v102, %v100
    %v111 = vpack.c.b16 %v103, %v101
    %vm120 = vcmask 523264
    %v122 = vsel %vm120, %v71, 0
    %124 = vmatpush.bf16.msra.mxu0 0
    %125 = vmatpush.bf16.msra.mxu0 0
    %126 = vmatpush.bf16.msra.mxu0 0
    %127 = vmatpush.bf16.msra.mxu0 0
    %128 = vmatpush.bf16.msra.mxu0 %v110
    %129 = vmatpush.bf16.msra.mxu0 %v108
    %130 = vmatpush.bf16.msra.mxu0 %v106
    %131 = vmatpush.bf16.msra.mxu0 %v104
    %132 = vmatmul.bf16.gmra.mxu0 %v122
    %v133 = vpop.f32.mrf.mxu0
    %v134 = vadd.f32 0.0, %v133
    %v135 = vpop.f32.mrf.mxu0
    %v136 = vadd.f32 0.0, %v135
    %137 = vdwg.mxu0
    %138 = vmatpush.bf16.msra.mxu0 0
    %139 = vmatpush.bf16.msra.mxu0 0
    %140 = vmatpush.bf16.msra.mxu0 0
    %141 = vmatpush.bf16.msra.mxu0 0
    %142 = vmatpush.bf16.msra.mxu0 %v111
    %143 = vmatpush.bf16.msra.mxu0 %v109
    %144 = vmatpush.bf16.msra.mxu0 %v107
    %145 = vmatpush.bf16.msra.mxu0 %v105
    %146 = vmatmul.bf16.gmra.mxu0 %v122
    %v147 = vpop.f32.mrf.mxu0
    %v148 = vadd.f32 0.0, %v147
    %v149 = vpop.f32.mrf.mxu0
    %v150 = vadd.f32 0.0, %v149
    %151 = vdwg.mxu0
    %v154 = vunpack.c.l.b16 %v59
    %v155 = vunpack.c.l.b16 %v60
    %v156 = vpack.c.b16 %v155, %v154
    %v165 = vunpack.c.l.b16 %v63
    %v166 = vunpack.c.h.b16 %v63
    %v167 = vunpack.c.l.b16 %v64
    %v168 = vunpack.c.h.b16 %v64
    %v169 = vunpack.c.l.b16 %v65
    %v170 = vunpack.c.h.b16 %v65
    %v171 = vunpack.c.l.b16 %v66
    %v172 = vunpack.c.h.b16 %v66
    %v173 = vunpack.c.l.b16 %v67
    %v174 = vunpack.c.h.b16 %v67
    %v175 = vunpack.c.l.b16 %v68
    %v176 = vunpack.c.h.b16 %v68
    %v177 = vunpack.c.l.b16 %v69
    %v178 = vunpack.c.h.b16 %v69
    %v179 = vunpack.c.l.b16 %v70
    %v180 = vunpack.c.h.b16 %v70
    %v181 = vpack.c.b16 %v167, %v165
    %v182 = vpack.c.b16 %v168, %v166
    %v183 = vpack.c.b16 %v171, %v169
    %v184 = vpack.c.b16 %v172, %v170
    %v185 = vpack.c.b16 %v175, %v173
    %v186 = vpack.c.b16 %v176, %v174
    %v187 = vpack.c.b16 %v179, %v177
    %v188 = vpack.c.b16 %v180, %v178
    %v198 = vsel %vm120, %v156, 0
    %200 = vmatpush.bf16.msra.mxu0 0
    %201 = vmatpush.bf16.msra.mxu0 0
    %202 = vmatpush.bf16.msra.mxu0 0
    %203 = vmatpush.bf16.msra.mxu0 0
    %204 = vmatpush.bf16.msra.mxu0 %v187
    %205 = vmatpush.bf16.msra.mxu0 %v185
    %206 = vmatpush.bf16.msra.mxu0 %v183
    %207 = vmatpush.bf16.msra.mxu0 %v181
    %208 = vmatmul.bf16.gmra.mxu0 %v198
    %v209 = vpop.f32.mrf.mxu0
    %v210 = vadd.f32 %v134, %v209
    %v211 = vpop.f32.mrf.mxu0
    %v212 = vadd.f32 %v136, %v211
    %213 = vdwg.mxu0
    %214 = vmatpush.bf16.msra.mxu0 0
    %215 = vmatpush.bf16.msra.mxu0 0
    %216 = vmatpush.bf16.msra.mxu0 0
    %217 = vmatpush.bf16.msra.mxu0 0
    %218 = vmatpush.bf16.msra.mxu0 %v188
    %219 = vmatpush.bf16.msra.mxu0 %v186
    %220 = vmatpush.bf16.msra.mxu0 %v184
    %221 = vmatpush.bf16.msra.mxu0 %v182
    %222 = vmatmul.bf16.gmra.mxu0 %v198
    %v223 = vpop.f32.mrf.mxu0
    %v224 = vadd.f32 %v148, %v223
    %v225 = vpop.f32.mrf.mxu0
    %v226 = vadd.f32 %v150, %v225
    %227 = vdwg.mxu0
    %v228 = vld [vmem:[%s4] sm:$0x3]
    %v230 = vperm.slane %v228, 0
    %v231 = vperm.slane %v228, 1
    %v234 = vadd.f32 %v210, %v230
    %v235 = vadd.f32 %v224, %v231
    %v236 = vadd.f32 %v212, %v230
    %v237 = vadd.f32 %v226, %v231
    %v238 = vxor.u32 %v234, 2147483648
    %v239 = vxor.u32 %v236, 2147483648
    %v240 = vmul.f32 %v238, 1.442695
    %v241 = vpow.pop %v240
    %v242 = vmul.f32 %v239, 1.442695
    %v243 = vpow.pop %v242
    %v244 = vadd.f32 %v241, 1.0
    %v245 = vadd.f32 %v243, 1.0
    %v246 = vrcp.pop %v244
    %v247 = vmul.f32 %v244, %v246
    %v248 = vsub.f32 1.0, %v247
    %v249 = vmul.f32 %v246, %v248
    %v250 = vadd.f32 %v246, %v249
    %vm251 = vweird.f32 %v244
    %vm252 = vweird.f32 %v246
    %vm253 = vmor %vm251, %vm252
    %v254 = vsel %vm253, %v246, %v250
    %v255 = vand.u32 2147483647, %v244
    %vm256 = vcmp.eq.f32.partialorder %v255, 8.507059e+37
    %v257 = vand.u32 %v244, 2147483648
    %v258 = vor.u32 1.1754944e-38, %v257
    %v259 = vsel %vm256, %v258, %v254
    %v260 = vmul.f32 1.0, %v259
    %v261 = vrcp.pop %v245
    %v262 = vmul.f32 %v245, %v261
    %v263 = vsub.f32 1.0, %v262
    %v264 = vmul.f32 %v261, %v263
    %v265 = vadd.f32 %v261, %v264
    %vm266 = vweird.f32 %v245
    %vm267 = vweird.f32 %v261
    %vm268 = vmor %vm266, %vm267
    %v269 = vsel %vm268, %v261, %v265
    %v270 = vand.u32 2147483647, %v245
    %vm271 = vcmp.eq.f32.partialorder %v270, 8.507059e+37
    %v272 = vand.u32 %v245, 2147483648
    %v273 = vor.u32 1.1754944e-38, %v272
    %v274 = vsel %vm271, %v273, %v269
    %v275 = vmul.f32 1.0, %v274
    %278 = vrot.lane.b32.xlu0 %v235, 64
    %v279 = vpop.permute.xlu0 %278
    %280 = vrot.lane.b32.xlu0 %v237, 64
    %v281 = vpop.permute.xlu0 %280
    %v284 = vmul.f32 %v260, %v279
    %v285 = vmul.f32 %v275, %v281
    %v286 = vadd.f32 %v235, %v284
    %v287 = vadd.f32 %v237, %v285
    %v288 = vtanh.pop %v286
    %v289 = vtanh.pop %v287
    %v290 = vsub.f32 1.0, %v260
    %v291 = vsub.f32 1.0, %v275
    %294 = vrot.lane.b32.xlu0 %v288, 64
    %v295 = vpop.permute.xlu0 %294
    %296 = vrot.lane.b32.xlu0 %v289, 64
    %v297 = vpop.permute.xlu0 %296
    %v300 = vmul.f32 %v290, %v295
    %v301 = vmul.f32 %v291, %v297
    %304 = vrot.lane.b32.xlu0 %v61, 64
    %v305 = vpop.permute.xlu0 %304
    %306 = vrot.lane.b32.xlu0 %v62, 64
    %v307 = vpop.permute.xlu0 %306
    %v310 = vmul.f32 %v260, %v305
    %v311 = vmul.f32 %v275, %v307
    %v312 = vadd.f32 %v300, %v310
    %v313 = vadd.f32 %v301, %v311
    %v314 = vpack.c.bf16 %v313, %v312
    %v315 = vld [vmem:[%s5] sm:$0xf]
    %v316 = vld [vmem:[%s5 + $0x4] sm:$0xf]
    %v317 = vld [vmem:[%s5 + $0x8] sm:$0xf]
    %v318 = vld [vmem:[%s5 + $0xc] sm:$0xf]
    %v319 = vld [vmem:[%s5 + $0x10] sm:$0xf]
    %v320 = vld [vmem:[%s5 + $0x14] sm:$0xf]
    %v321 = vld [vmem:[%s5 + $0x18] sm:$0xf]
    %v322 = vld [vmem:[%s5 + $0x1c] sm:$0xf]
    %v323 = vld [vmem:[%s6] sm:$0x1]
    %v325 = vperm.slane %v323, 0
    %328 = vrot.lane.b32.xlu0 %v314, 64
    %v329 = vpop.permute.xlu0 %328
    %v338 = vunpack.c.l.b16 %v315
    %v339 = vunpack.c.l.b16 %v316
    %v340 = vunpack.c.l.b16 %v317
    %v341 = vunpack.c.l.b16 %v318
    %v342 = vunpack.c.l.b16 %v319
    %v343 = vunpack.c.l.b16 %v320
    %v344 = vunpack.c.l.b16 %v321
    %v345 = vunpack.c.l.b16 %v322
    %v346 = vpack.c.b16 %v339, %v338
    %v347 = vpack.c.b16 %v341, %v340
    %v348 = vpack.c.b16 %v343, %v342
    %v349 = vpack.c.b16 %v345, %v344
    %v355 = vsel %vm120, %v329, 0
    %357 = vmatpush.bf16.msra.mxu0 0
    %358 = vmatpush.bf16.msra.mxu0 0
    %359 = vmatpush.bf16.msra.mxu0 0
    %360 = vmatpush.bf16.msra.mxu0 0
    %361 = vmatpush.bf16.msra.mxu0 %v349
    %362 = vmatpush.bf16.msra.mxu0 %v348
    %363 = vmatpush.bf16.msra.mxu0 %v347
    %364 = vmatpush.bf16.msra.mxu0 %v346
    %365 = vmatmul.bf16.gmra.mxu0 %v355
    %v366 = vpop.f32.mrf.mxu0
    %v367 = vadd.f32 %v325, %v366
    %v368 = vpop.f32.mrf.mxu0
    %v369 = vadd.f32 %v325, %v368
    %370 = vdwg.mxu0
    %v371 = vlaneseq
    %v372 = vand.u32 %v371, 127
    %vm373 = vcmp.lt.s32.totalorder %v372, 18
    %v374 = vsel %vm373, %v367, -1e+30
    %v375 = vsel %vm373, %v369, -1e+30
    %v376 = vsel %vm120, %v374, -inf
    %377 = vmax.xlane.f32.xlu0 %v376
    %v378 = vpop.xlane.xlu0 %377
    %v379 = vsel %vm120, %v375, -inf
    %380 = vmax.xlane.f32.xlu0 %v379
    %v381 = vpop.xlane.xlu0 %380
    %v382 = vsub.f32 %v374, %v378
    %v383 = vsub.f32 %v375, %v381
    %v384 = vmul.f32 %v382, 1.442695
    %v385 = vpow.pop %v384
    %v386 = vmul.f32 %v383, 1.442695
    %v387 = vpow.pop %v386
    %v388 = vsel %vm120, %v385, 0.0
    %389 = vadd.xlane.f32.xlu0 %v388
    %v390 = vpop.xlane.xlu0 %389
    %v391 = vsel %vm120, %v387, 0.0
    %392 = vadd.xlane.f32.xlu0 %v391
    %v393 = vpop.xlane.xlu0 %392
    %v394 = vlog2.pop %v390
    %v395 = vmul.f32 %v394, 0.6931472
    %v396 = vlog2.pop %v393
    %v397 = vmul.f32 %v396, 0.6931472
    %v398 = vsub.f32 %v382, %v395
    %v399 = vsub.f32 %v383, %v397
    %402 = vrot.lane.b32.xlu0 %v312, 64
    %v403 = vpop.permute.xlu0 %402
    %404 = vrot.lane.b32.xlu0 %v313, 64
    %v405 = vpop.permute.xlu0 %404
    %408 = vst.msk [vmem:[%s7] sm:$0xff] %vm120, %v403
    %409 = vst.msk [vmem:[%s7 + $0x8] sm:$0xff] %vm120, %v405
    %412 = vrot.lane.b32.xlu0 %v398, 64
    %v413 = vpop.permute.xlu0 %412
    %414 = vrot.lane.b32.xlu0 %v399, 64
    %v415 = vpop.permute.xlu0 %414
    %vm418 = vcmask 1048064
    %419 = vst.msk [vmem:[%s7] sm:$0xff] %vm418, %v413
    %420 = vst.msk [vmem:[%s7 + $0x8] sm:$0xff] %vm418, %v415
    // Predicated region
    $region38: #{sarnn_forward.1} parent=1 // pred_check
      _
    $region39: #{sarnn_forward.1} parent=1 // pred_check_branch
      %422 = sbr.rel (0) target = $region41
    $region40: #{sarnn_forward.1} parent=1 // pred_region
      _
    $region41: #{sarnn_forward.1} parent=1 // pred_fallthru
      _
    // Predicated region
    $region42: #{sarnn_forward.1} parent=1 // pred_check
      _
    $region43: #{sarnn_forward.1} parent=1 // pred_check_branch
      %424 = sbr.rel (0) target = $region45
    $region44: #{sarnn_forward.1} parent=1 // pred_region
      _
    $region45: #{sarnn_forward.1} parent=1 // pred_fallthru
      _
    %425 = vsyncpa [#allocation3], 1
    %426 = vsyncpa [#allocation5], 1

</llo_original>
